<compile_context>
chip_gen: v5e
topology: v5e:2x2
jax: 0.10.0
libtpu: 0.0.40
codegen_flags: <defaults>
</compile_context>

<pallas_src>
import functools

import jax
import jax.numpy as jnp
from jax.experimental import pallas as pl
from jax.experimental.pallas import tpu as pltpu


def _cdiv(a, b):
    return -(-a // b)


def _round_up(a, b):
    return _cdiv(a, b) * b


def _device_kind():
    try:
        return jax.devices()[0].device_kind.lower()
    except Exception:
        return ""


def _sigma(x):
    # log(exp(x) + exp(-x)) == |x| + log1p(exp(-2|x|)); robust for all x.
    ax = jnp.abs(x)
    return ax + jnp.log1p(jnp.exp(-2.0 * ax))


def _otresnet_kernel(st_ref, k0_ref, b0_ref, k1_ref, b1_ref, out_ref, *, step_size):
    st = st_ref[...]                                                      # (E, TB)
    # First layer: u0 = sigma(K0 @ s_T + b0)
    a0 = jnp.dot(k0_ref[...], st, preferred_element_type=jnp.float32) + b0_ref[...]
    u0 = _sigma(a0)                                                       # (M, TB)
    # Second layer: u1 = u0 + h * sigma(K1 @ u0 + b1)
    a1 = jnp.dot(k1_ref[...], u0, preferred_element_type=jnp.float32) + b1_ref[...]
    u1 = u0 + step_size * _sigma(a1)
    out_ref[...] = u1.astype(out_ref.dtype)


def otresnet_forward_T(st, K0, b0, K1, b1, *, step_size=0.01, batch_tile=None):
    """Zero-relayout entry point.

    st: (E, B) float32 with the batch on the trailing (lane) axis.
    Returns (M, B).  Batch padding (to a multiple of the lane-aligned tile)
    is handled internally and sliced off before returning.
    """
    E, B = st.shape
    M = K0.shape[0]

    kind = _device_kind()
    is_v7 = ("v7" in kind) or ("7x" in kind)

    # Per-device default tile: big enough that per-step DMA dominates the
    # ~0.35 us fixed grid-step overhead (review item 1/2/4).
    if batch_tile is None:
        if is_v7:
            batch_tile = 32768
        elif "v5" in kind:
            batch_tile = 8192
        else:
            batch_tile = 16384
    batch_tile = max(128, _round_up(batch_tile, 128))

    # Balanced tiles: n_steps from the cap, then tb = round_up(cdiv(B, n), 128)
    # so per-step padding waste is < 128 columns (review item 7).
    n_steps = max(1, _cdiv(B, batch_tile))
    if is_v7:
        # v7x has 2 TensorCores sharing the "parallel" grid axis: keep the
        # step count >= 2 and even so neither core is stranded.  v5e/v6e are
        # single-TC, so splitting only adds per-step overhead (review items 2-4).
        if n_steps == 1 and B > 128:
            n_steps = 2
        elif n_steps > 1 and n_steps % 2 == 1:
            n_steps += 1
    tb = _round_up(_cdiv(B, n_steps), 128)
    b_pad = n_steps * tb

    if b_pad > B:
        st = jnp.pad(st, ((0, 0), (0, b_pad - B)))

    b0c = b0.reshape(M, 1)
    b1c = b1.reshape(M, 1)

    kernel = functools.partial(_otresnet_kernel, step_size=step_size)

    cost = pl.CostEstimate(
        flops=2 * b_pad * (E * M + M * M),
        transcendentals=4 * b_pad * M,                 # 2 sigma evals x (exp + log1p)
        bytes_accessed=4 * (b_pad * (E + M) + M * E + M * M + 2 * M),
    )

    # Explicit VMEM budget so large tiles fit the double-buffered pipeline:
    # 2x input tile + 2x output tile + intermediates; 48 MiB cap on v7x
    # (64 MiB physical), 64 MiB elsewhere (128 MiB physical).
    vmem_limit = (48 << 20) if is_v7 else (64 << 20)

    out_t = pl.pallas_call(
        kernel,
        out_shape=jax.ShapeDtypeStruct((M, b_pad), st.dtype),
        grid_spec=pltpu.PrefetchScalarGridSpec(
            num_scalar_prefetch=0,
            grid=(n_steps,),
            in_specs=[
                pl.BlockSpec((E, tb), lambda i: (0, i)),   # s_T tile (batch on lanes)
                pl.BlockSpec((M, E), lambda i: (0, 0)),    # K0 (full, resident)
                pl.BlockSpec((M, 1), lambda i: (0, 0)),    # b0
                pl.BlockSpec((M, M), lambda i: (0, 0)),    # K1 (full, resident)
                pl.BlockSpec((M, 1), lambda i: (0, 0)),    # b1
            ],
            out_specs=pl.BlockSpec((M, tb), lambda i: (0, i)),
        ),
        compiler_params=pltpu.CompilerParams(
            dimension_semantics=("parallel",),
            vmem_limit_bytes=vmem_limit,
        ),
        cost_estimate=cost,
    )(st, K0, b0c, K1, b1c)

    return out_t[:, :B]


def otresnet_forward(s, K0, b0, K1, b1, *, step_size=0.01, batch_tile=None):
    """Module-compatible interface: s (B, E) -> (B, M).

    Note: this path pays two XLA relayouts (s.T and out.T).  Callers that can
    keep activations in the (E, B)/(M, B) layout should use otresnet_forward_T
    directly to avoid the extra HBM traffic (perf-review item 5).
    """
    out_t = otresnet_forward_T(
        s.T, K0, b0, K1, b1, step_size=step_size, batch_tile=batch_tile
    )
    return out_t.T


def _reference_forward(s, K0, b0, K1, b1, step_size):
    # Independent formulation of sigma: logaddexp(x, -x) == log(exp(x)+exp(-x)).
    def sigma(x):
        return jnp.logaddexp(x, -x)
    u0 = sigma(s @ K0.T + b0)
    return u0 + step_size * sigma(u0 @ K1.T + b1)


if __name__ == "__main__":
    batch_size = 300        # deliberately not a multiple of 128 to exercise padding
    event_size = 16
    hidden_size = 32
    step_size = 0.01

    key = jax.random.PRNGKey(0)
    k_s, k_K0, k_b0, k_K1, k_b1 = jax.random.split(key, 5)

    # Deterministic parameter init mirroring OTResNet.__init__.
    divisor = max(event_size ** 2, 10)
    K0_delta = jax.random.normal(k_K0, (hidden_size, event_size), jnp.float32) / divisor
    b0 = jax.random.normal(k_b0, (hidden_size,), jnp.float32) / divisor
    K1_delta = jax.random.normal(k_K1, (hidden_size, hidden_size), jnp.float32) / divisor
    b1 = jax.random.normal(k_b1, (hidden_size,), jnp.float32) / divisor

    # Properties K0 / K1 (rectangular / square identity + delta/1000).
    K0 = jnp.eye(hidden_size, event_size, dtype=jnp.float32) + K0_delta / 1000.0
    K1 = jnp.eye(hidden_size, hidden_size, dtype=jnp.float32) + K1_delta / 1000.0

    s = jax.random.normal(k_s, (batch_size, event_size), jnp.float32)

    out = otresnet_forward(s, K0, b0, K1, b1, step_size=step_size)
    out = jax.block_until_ready(out)

    ref = _reference_forward(s, K0, b0, K1, b1, step_size)
    assert out.shape == (batch_size, hidden_size)
    assert jnp.allclose(out, ref, atol=1e-5, rtol=1e-5), "mismatch vs JAX reference"

    # Also exercise the zero-relayout (E,B)->(M,B) path.
    out_t = jax.block_until_ready(
        otresnet_forward_T(s.T, K0, b0, K1, b1, step_size=step_size)
    )
    assert out_t.shape == (hidden_size, batch_size)
    assert jnp.allclose(out_t.T, ref, atol=1e-5, rtol=1e-5), "mismatch (T path)"

    print("KERNEL_OK")
</pallas_src>

<mosaic_0001>
module attributes {stable_mosaic.version = 11 : i64} {
  func.func @_otresnet_kernel(%arg0: i32, %arg1: memref<16x384xf32, #tpu.memory_space<vmem>>, %arg2: memref<32x16xf32, #tpu.memory_space<vmem>>, %arg3: memref<32x1xf32, #tpu.memory_space<vmem>>, %arg4: memref<32x32xf32, #tpu.memory_space<vmem>>, %arg5: memref<32x1xf32, #tpu.memory_space<vmem>>, %arg6: memref<32x384xf32, #tpu.memory_space<vmem>>) attributes {dimension_semantics = [#tpu.dimension_semantics<parallel>], iteration_bounds = array<i64: 1>, scalar_prefetch = 0 : i64, scratch_operands = 0 : i64, tpu.core_type = #tpu.core_type<tc>, window_params = [{transform_indices = @transform_0, window_bounds = array<i64: 16, 384>}, {pipeline_mode = #tpu.pipeline_mode<synchronous>, transform_indices = @transform_1, window_bounds = array<i64: 32, 16>}, {pipeline_mode = #tpu.pipeline_mode<synchronous>, transform_indices = @transform_2, window_bounds = array<i64: 32, 1>}, {pipeline_mode = #tpu.pipeline_mode<synchronous>, transform_indices = @transform_3, window_bounds = array<i64: 32, 32>}, {pipeline_mode = #tpu.pipeline_mode<synchronous>, transform_indices = @transform_4, window_bounds = array<i64: 32, 1>}, {transform_indices = @transform_5, window_bounds = array<i64: 32, 384>}]} {
    %c0 = arith.constant 0 : index
    %c0_0 = arith.constant 0 : index
    %0 = vector.load %arg1[%c0, %c0_0] : memref<16x384xf32, #tpu.memory_space<vmem>>, vector<16x384xf32>
    %c0_1 = arith.constant 0 : index
    %c0_2 = arith.constant 0 : index
    %1 = vector.load %arg2[%c0_1, %c0_2] : memref<32x16xf32, #tpu.memory_space<vmem>>, vector<32x16xf32>
    %cst = arith.constant dense<0.000000e+00> : vector<32x384xf32>
    %2 = tpu.matmul %1, %0, %cst {dimension_numbers = #tpu.dot_dimension_numbers<[1], [0], [0], [1], [0, 0, 1, 1], [], []>} : vector<32x16xf32>, vector<16x384xf32>, vector<32x384xf32> -> vector<32x384xf32>
    %c0_3 = arith.constant 0 : index
    %c0_4 = arith.constant 0 : index
    %3 = vector.load %arg3[%c0_3, %c0_4] : memref<32x1xf32, #tpu.memory_space<vmem>>, vector<32x1xf32>
    %4 = vector.broadcast %3 : vector<32x1xf32> to vector<32x384xf32>
    %5 = arith.addf %2, %4 : vector<32x384xf32>
    %6 = math.absf %5 : vector<32x384xf32>
    %cst_5 = arith.constant -2.000000e+00 : f32
    %7 = vector.broadcast %cst_5 : f32 to vector<32x384xf32>
    %8 = arith.mulf %7, %6 : vector<32x384xf32>
    %9 = math.exp %8 : vector<32x384xf32>
    %10 = math.log1p %9 : vector<32x384xf32>
    %11 = arith.addf %6, %10 : vector<32x384xf32>
    %c0_6 = arith.constant 0 : index
    %c0_7 = arith.constant 0 : index
    %12 = vector.load %arg4[%c0_6, %c0_7] : memref<32x32xf32, #tpu.memory_space<vmem>>, vector<32x32xf32>
    %cst_8 = arith.constant dense<0.000000e+00> : vector<32x384xf32>
    %13 = tpu.matmul %12, %11, %cst_8 {dimension_numbers = #tpu.dot_dimension_numbers<[1], [0], [0], [1], [0, 0, 1, 1], [], []>} : vector<32x32xf32>, vector<32x384xf32>, vector<32x384xf32> -> vector<32x384xf32>
    %c0_9 = arith.constant 0 : index
    %c0_10 = arith.constant 0 : index
    %14 = vector.load %arg5[%c0_9, %c0_10] : memref<32x1xf32, #tpu.memory_space<vmem>>, vector<32x1xf32>
    %15 = vector.broadcast %14 : vector<32x1xf32> to vector<32x384xf32>
    %16 = arith.addf %13, %15 : vector<32x384xf32>
    %17 = math.absf %16 : vector<32x384xf32>
    %cst_11 = arith.constant -2.000000e+00 : f32
    %18 = vector.broadcast %cst_11 : f32 to vector<32x384xf32>
    %19 = arith.mulf %18, %17 : vector<32x384xf32>
    %20 = math.exp %19 : vector<32x384xf32>
    %21 = math.log1p %20 : vector<32x384xf32>
    %22 = arith.addf %17, %21 : vector<32x384xf32>
    %cst_12 = arith.constant 0.00999999977 : f32
    %23 = vector.broadcast %cst_12 : f32 to vector<32x384xf32>
    %24 = arith.mulf %23, %22 : vector<32x384xf32>
    %25 = arith.addf %11, %24 : vector<32x384xf32>
    %c0_13 = arith.constant 0 : index
    %c0_14 = arith.constant 0 : index
    %26 = vector.load %arg6[%c0_13, %c0_14] : memref<32x384xf32, #tpu.memory_space<vmem>>, vector<32x384xf32>
    tpu.vector_store %arg6[%c0_13, %c0_14], %25 {strides = array<i32>} : memref<32x384xf32, #tpu.memory_space<vmem>>, vector<32x384xf32>,
    return
  }
  func.func @transform_0(%arg0: i32) -> (i32, i32) {
    %c0_i32 = arith.constant 0 : i32
    %c0_i32_0 = arith.constant 0 : i32
    return %c0_i32, %arg0 : i32, i32
  }
  func.func @transform_1(%arg0: i32) -> (i32, i32) {
    %c0_i32 = arith.constant 0 : i32
    %c0_i32_0 = arith.constant 0 : i32
    %c0_i32_1 = arith.constant 0 : i32
    return %c0_i32, %c0_i32_0 : i32, i32
  }
  func.func @transform_2(%arg0: i32) -> (i32, i32) {
    %c0_i32 = arith.constant 0 : i32
    %c0_i32_0 = arith.constant 0 : i32
    %c0_i32_1 = arith.constant 0 : i32
    return %c0_i32, %c0_i32_0 : i32, i32
  }
  func.func @transform_3(%arg0: i32) -> (i32, i32) {
    %c0_i32 = arith.constant 0 : i32
    %c0_i32_0 = arith.constant 0 : i32
    %c0_i32_1 = arith.constant 0 : i32
    return %c0_i32, %c0_i32_0 : i32, i32
  }
  func.func @transform_4(%arg0: i32) -> (i32, i32) {
    %c0_i32 = arith.constant 0 : i32
    %c0_i32_0 = arith.constant 0 : i32
    %c0_i32_1 = arith.constant 0 : i32
    return %c0_i32, %c0_i32_0 : i32, i32
  }
  func.func @transform_5(%arg0: i32) -> (i32, i32) {
    %c0_i32 = arith.constant 0 : i32
    %c0_i32_0 = arith.constant 0 : i32
    return %c0_i32, %arg0 : i32, i32
  }
}

</mosaic_0001>

<llo_original>
// kernel: tpu_custom_call.1
$region0: #{tpu_custom_call.1}
  #allocation0 [shape = 'u32[]', space=smem, size = 0x4, offset = 0x4, fixed_abs, tag = 'smem constant byte address 0x4 - core index']
  #allocation1 [shape = 'u32[72,128]{1,0:T(1,128)}', space=vmem, size = 0x9000, scoped, tag = 'internal scratch']
  %s0 = inlined_call_operand.vmem [shape: f32[16,384], index: 0, kind: input, shape index: {}]
  %s1 = inlined_call_operand.vmem [shape: f32[32,16], index: 1, kind: input, shape index: {}]
  %s2 = inlined_call_operand.vmem [shape: f32[32,1], index: 2, kind: input, shape index: {}]
  %s3 = inlined_call_operand.vmem [shape: f32[32,32], index: 3, kind: input, shape index: {}]
  %s4 = inlined_call_operand.vmem [shape: f32[32,1], index: 4, kind: input, shape index: {}]
  %s5 = inlined_call_operand.hbm [shape: f32[32,384], index: 5, kind: output, shape index: {}]
  %s6 = sld [smem:[#allocation0]]
  $region30: #{tpu_custom_call.1} parent=0
    _
  %s8 = ssub.s32 1, %s6
  %s9 = scalar_select 0, %s8, %s6
  $region1: #{tpu_custom_call.1} parent=0
    #allocation2 [shape = 'u8[49152]{0}', space=vmem, size = 0xc000, scoped, tag = 'output window, operand 0, single buffered']
    #allocation3 [shape = 's32[1]{0}', space=sflag, size = 0x4, scoped, tag = 'scoped memory for tpu_custom_call.1']
    %10 = vsyncpa [#allocation3], 0
    // Predicated region
    $region2: #{tpu_custom_call.1} parent=1 // pred_check
      _
    $region3: #{tpu_custom_call.1} parent=1 // pred_check_branch
      %12 = sbr.rel (0) target = $region5
    $region4: #{tpu_custom_call.1} parent=1 // pred_region
      _
    $region5: #{tpu_custom_call.1} parent=1 // pred_fallthru
      _
    // Predicated region
    $region6: #{tpu_custom_call.1} parent=1 // pred_check
      _
    $region7: #{tpu_custom_call.1} parent=1 // pred_check_branch
      %14 = sbr.rel (0) target = $region9
    $region8: #{tpu_custom_call.1} parent=1 // pred_region
      _
    $region9: #{tpu_custom_call.1} parent=1 // pred_fallthru
      _
    // Predicated region
    $region10: #{tpu_custom_call.1} parent=1 // pred_check
      _
    $region11: #{tpu_custom_call.1} parent=1 // pred_check_branch
      %16 = sbr.rel (0) target = $region13
    $region12: #{tpu_custom_call.1} parent=1 // pred_region
      _
    $region13: #{tpu_custom_call.1} parent=1 // pred_fallthru
      _
    // Predicated region
    $region14: #{tpu_custom_call.1} parent=1 // pred_check
      _
    $region15: #{tpu_custom_call.1} parent=1 // pred_check_branch
      %18 = sbr.rel (0) target = $region17
    $region16: #{tpu_custom_call.1} parent=1 // pred_region
      _
    $region17: #{tpu_custom_call.1} parent=1 // pred_fallthru
      _
    // Predicated region
    $region18: #{tpu_custom_call.1} parent=1 // pred_check
      _
    $region19: #{tpu_custom_call.1} parent=1 // pred_check_branch
      %20 = sbr.rel (0) target = $region21
    $region20: #{tpu_custom_call.1} parent=1 // pred_region
      _
    $region21: #{tpu_custom_call.1} parent=1 // pred_fallthru
      _
    %v21 = vld [vmem:[%s0] sm:$0xff]
    %v22 = vld [vmem:[%s0 + $0x8] sm:$0xff]
    %v23 = vld [vmem:[%s0 + $0x10] sm:$0xff]
    %v24 = vld [vmem:[%s0 + $0x18] sm:$0xff]
    %v25 = vld [vmem:[%s0 + $0x20] sm:$0xff]
    %v26 = vld [vmem:[%s0 + $0x28] sm:$0xff]
    %v27 = vld [vmem:[%s1] sm:$0xff]
    %v28 = vld [vmem:[%s1 + $0x8] sm:$0xff]
    %v29 = vld [vmem:[%s1 + $0x10] sm:$0xff]
    %v30 = vld [vmem:[%s1 + $0x18] sm:$0xff]
    %v31 = vld [vmem:[%s2] sm:$0xff]
    %v32 = vld [vmem:[%s2 + $0x8] sm:$0xff]
    %v33 = vld [vmem:[%s2 + $0x10] sm:$0xff]
    %v34 = vld [vmem:[%s2 + $0x18] sm:$0xff]
    %36 = vset.pattern.permute.xlu0 0
    %37 = vperm.xlu0 %36, %v31
    %v38 = vpop.permute.xlu0 %37
    %41 = vset.pattern.permute.xlu0 0
    %42 = vperm.xlu0 %41, %v32
    %v43 = vpop.permute.xlu0 %42
    %46 = vset.pattern.permute.xlu0 0
    %47 = vperm.xlu0 %46, %v33
    %v48 = vpop.permute.xlu0 %47
    %51 = vset.pattern.permute.xlu0 0
    %52 = vperm.xlu0 %51, %v34
    %v53 = vpop.permute.xlu0 %52
    %vm55 = vcmask 130048
    %v57 = vsel %vm55, %v27, 0
    %v60 = vsel %vm55, %v28, 0
    %v63 = vsel %vm55, %v29, 0
    %v66 = vsel %vm55, %v30, 0
    %68 = vmatpush.msra.mxu0 0.0
    %69 = vmatpush.msra.mxu0 0.0
    %70 = vmatpush.msra.mxu0 0.0
    %71 = vmatpush.msra.mxu0 0.0
    %72 = vmatpush.msra.mxu0 0.0
    %73 = vmatpush.msra.mxu0 0.0
    %74 = vmatpush.msra.mxu0 0.0
    %75 = vmatpush.msra.mxu0 0.0
    %76 = vmatpush.msra.mxu0 0.0
    %77 = vmatpush.msra.mxu0 0.0
    %78 = vmatpush.msra.mxu0 0.0
    %79 = vmatpush.msra.mxu0 0.0
    %80 = vmatpush.msra.mxu0 0.0
    %81 = vmatpush.msra.mxu0 0.0
    %82 = vmatpush.msra.mxu0 %v24
    %83 = vmatpush.msra.mxu0 %v21
    %84 = vmatmul.f32.gmra.mxu0 %v57
    %v85 = vpop.f32.mrf.mxu0
    %v86 = vadd.f32 %v38, %v85
    %87 = vmatmul.f32.gmra.mxu0 %v60
    %v88 = vpop.f32.mrf.mxu0
    %v89 = vadd.f32 %v43, %v88
    %90 = vmatmul.f32.gmra.mxu0 %v63
    %v91 = vpop.f32.mrf.mxu0
    %v92 = vadd.f32 %v48, %v91
    %93 = vmatmul.f32.gmra.mxu0 %v66
    %v94 = vpop.f32.mrf.mxu0
    %v95 = vadd.f32 %v53, %v94
    %96 = vdwg.mxu0
    %97 = vmatpush.msra.mxu0 0.0
    %98 = vmatpush.msra.mxu0 0.0
    %99 = vmatpush.msra.mxu0 0.0
    %100 = vmatpush.msra.mxu0 0.0
    %101 = vmatpush.msra.mxu0 0.0
    %102 = vmatpush.msra.mxu0 0.0
    %103 = vmatpush.msra.mxu0 0.0
    %104 = vmatpush.msra.mxu0 0.0
    %105 = vmatpush.msra.mxu0 0.0
    %106 = vmatpush.msra.mxu0 0.0
    %107 = vmatpush.msra.mxu0 0.0
    %108 = vmatpush.msra.mxu0 0.0
    %109 = vmatpush.msra.mxu0 0.0
    %110 = vmatpush.msra.mxu0 0.0
    %111 = vmatpush.msra.mxu0 %v25
    %112 = vmatpush.msra.mxu0 %v22
    %113 = vmatmul.f32.gmra.mxu0 %v57
    %v114 = vpop.f32.mrf.mxu0
    %v115 = vadd.f32 %v38, %v114
    %116 = vmatmul.f32.gmra.mxu0 %v60
    %v117 = vpop.f32.mrf.mxu0
    %v118 = vadd.f32 %v43, %v117
    %119 = vmatmul.f32.gmra.mxu0 %v63
    %v120 = vpop.f32.mrf.mxu0
    %v121 = vadd.f32 %v48, %v120
    %122 = vmatmul.f32.gmra.mxu0 %v66
    %v123 = vpop.f32.mrf.mxu0
    %v124 = vadd.f32 %v53, %v123
    %125 = vdwg.mxu0
    %126 = vmatpush.msra.mxu0 0.0
    %127 = vmatpush.msra.mxu0 0.0
    %128 = vmatpush.msra.mxu0 0.0
    %129 = vmatpush.msra.mxu0 0.0
    %130 = vmatpush.msra.mxu0 0.0
    %131 = vmatpush.msra.mxu0 0.0
    %132 = vmatpush.msra.mxu0 0.0
    %133 = vmatpush.msra.mxu0 0.0
    %134 = vmatpush.msra.mxu0 0.0
    %135 = vmatpush.msra.mxu0 0.0
    %136 = vmatpush.msra.mxu0 0.0
    %137 = vmatpush.msra.mxu0 0.0
    %138 = vmatpush.msra.mxu0 0.0
    %139 = vmatpush.msra.mxu0 0.0
    %140 = vmatpush.msra.mxu0 %v26
    %141 = vmatpush.msra.mxu0 %v23
    %142 = vmatmul.f32.gmra.mxu0 %v57
    %v143 = vpop.f32.mrf.mxu0
    %v144 = vadd.f32 %v38, %v143
    %145 = vmatmul.f32.gmra.mxu0 %v60
    %v146 = vpop.f32.mrf.mxu0
    %v147 = vadd.f32 %v43, %v146
    %148 = vmatmul.f32.gmra.mxu0 %v63
    %v149 = vpop.f32.mrf.mxu0
    %v150 = vadd.f32 %v48, %v149
    %151 = vmatmul.f32.gmra.mxu0 %v66
    %v152 = vpop.f32.mrf.mxu0
    %v153 = vadd.f32 %v53, %v152
    %154 = vdwg.mxu0
    %v155 = vand.u32 2147483647, %v86
    %v156 = vand.u32 2147483647, %v115
    %v157 = vand.u32 2147483647, %v144
    %v158 = vand.u32 2147483647, %v89
    %v159 = vand.u32 2147483647, %v118
    %v160 = vand.u32 2147483647, %v147
    %v161 = vand.u32 2147483647, %v92
    %v162 = vand.u32 2147483647, %v121
    %v163 = vand.u32 2147483647, %v150
    %v164 = vand.u32 2147483647, %v95
    %v165 = vand.u32 2147483647, %v124
    %v166 = vand.u32 2147483647, %v153
    %v167 = vmul.f32 %v155, -2.0
    %v168 = vmul.f32 %v156, -2.0
    %v169 = vmul.f32 %v157, -2.0
    %v170 = vmul.f32 %v158, -2.0
    %v171 = vmul.f32 %v159, -2.0
    %v172 = vmul.f32 %v160, -2.0
    %v173 = vmul.f32 %v161, -2.0
    %v174 = vmul.f32 %v162, -2.0
    %v175 = vmul.f32 %v163, -2.0
    %v176 = vmul.f32 %v164, -2.0
    %v177 = vmul.f32 %v165, -2.0
    %v178 = vmul.f32 %v166, -2.0
    %v179 = vmul.f32 %v167, 1.442695
    %v180 = vpow.pop %v179
    %v181 = vmul.f32 %v168, 1.442695
    %v182 = vpow.pop %v181
    %v183 = vmul.f32 %v169, 1.442695
    %v184 = vpow.pop %v183
    %v185 = vmul.f32 %v170, 1.442695
    %v186 = vpow.pop %v185
    %v187 = vmul.f32 %v171, 1.442695
    %v188 = vpow.pop %v187
    %v189 = vmul.f32 %v172, 1.442695
    %v190 = vpow.pop %v189
    %v191 = vmul.f32 %v173, 1.442695
    %v192 = vpow.pop %v191
    %v193 = vmul.f32 %v174, 1.442695
    %v194 = vpow.pop %v193
    %v195 = vmul.f32 %v175, 1.442695
    %v196 = vpow.pop %v195
    %v197 = vmul.f32 %v176, 1.442695
    %v198 = vpow.pop %v197
    %v199 = vmul.f32 %v177, 1.442695
    %v200 = vpow.pop %v199
    %v201 = vmul.f32 %v178, 1.442695
    %v202 = vpow.pop %v201
    %v203 = vadd.f32 %v180, 1.0
    %v204 = vlog2.pop %v203
    %v205 = vmul.f32 %v204, 0.6931472
    %v206 = vmul.f32 -0.5, %v180
    %v207 = vadd.f32 %v206, 1.0
    %v208 = vmul.f32 %v207, %v180
    %v209 = vand.u32 2147483647, %v180
    %vm210 = vcmp.lt.f32.partialorder %v209, 0.0004427343
    %v211 = vsel %vm210, %v208, %v205
    %v212 = vadd.f32 %v182, 1.0
    %v213 = vlog2.pop %v212
    %v214 = vmul.f32 %v213, 0.6931472
    %v215 = vmul.f32 -0.5, %v182
    %v216 = vadd.f32 %v215, 1.0
    %v217 = vmul.f32 %v216, %v182
    %v218 = vand.u32 2147483647, %v182
    %vm219 = vcmp.lt.f32.partialorder %v218, 0.0004427343
    %v220 = vsel %vm219, %v217, %v214
    %v221 = vadd.f32 %v184, 1.0
    %v222 = vlog2.pop %v221
    %v223 = vmul.f32 %v222, 0.6931472
    %v224 = vmul.f32 -0.5, %v184
    %v225 = vadd.f32 %v224, 1.0
    %v226 = vmul.f32 %v225, %v184
    %v227 = vand.u32 2147483647, %v184
    %vm228 = vcmp.lt.f32.partialorder %v227, 0.0004427343
    %v229 = vsel %vm228, %v226, %v223
    %v230 = vadd.f32 %v186, 1.0
    %v231 = vlog2.pop %v230
    %v232 = vmul.f32 %v231, 0.6931472
    %v233 = vmul.f32 -0.5, %v186
    %v234 = vadd.f32 %v233, 1.0
    %v235 = vmul.f32 %v234, %v186
    %v236 = vand.u32 2147483647, %v186
    %vm237 = vcmp.lt.f32.partialorder %v236, 0.0004427343
    %v238 = vsel %vm237, %v235, %v232
    %v239 = vadd.f32 %v188, 1.0
    %v240 = vlog2.pop %v239
    %v241 = vmul.f32 %v240, 0.6931472
    %v242 = vmul.f32 -0.5, %v188
    %v243 = vadd.f32 %v242, 1.0
    %v244 = vmul.f32 %v243, %v188
    %v245 = vand.u32 2147483647, %v188
    %vm246 = vcmp.lt.f32.partialorder %v245, 0.0004427343
    %v247 = vsel %vm246, %v244, %v241
    %v248 = vadd.f32 %v190, 1.0
    %v249 = vlog2.pop %v248
    %v250 = vmul.f32 %v249, 0.6931472
    %v251 = vmul.f32 -0.5, %v190
    %v252 = vadd.f32 %v251, 1.0
    %v253 = vmul.f32 %v252, %v190
    %v254 = vand.u32 2147483647, %v190
    %vm255 = vcmp.lt.f32.partialorder %v254, 0.0004427343
    %v256 = vsel %vm255, %v253, %v250
    %v257 = vadd.f32 %v192, 1.0
    %v258 = vlog2.pop %v257
    %v259 = vmul.f32 %v258, 0.6931472
    %v260 = vmul.f32 -0.5, %v192
    %v261 = vadd.f32 %v260, 1.0
    %v262 = vmul.f32 %v261, %v192
    %v263 = vand.u32 2147483647, %v192
    %vm264 = vcmp.lt.f32.partialorder %v263, 0.0004427343
    %v265 = vsel %vm264, %v262, %v259
    %v266 = vadd.f32 %v194, 1.0
    %v267 = vlog2.pop %v266
    %v268 = vmul.f32 %v267, 0.6931472
    %v269 = vmul.f32 -0.5, %v194
    %v270 = vadd.f32 %v269, 1.0
    %v271 = vmul.f32 %v270, %v194
    %v272 = vand.u32 2147483647, %v194
    %vm273 = vcmp.lt.f32.partialorder %v272, 0.0004427343
    %v274 = vsel %vm273, %v271, %v268
    %v275 = vadd.f32 %v196, 1.0
    %v276 = vlog2.pop %v275
    %v277 = vmul.f32 %v276, 0.6931472
    %v278 = vmul.f32 -0.5, %v196
    %v279 = vadd.f32 %v278, 1.0
    %v280 = vmul.f32 %v279, %v196
    %v281 = vand.u32 2147483647, %v196
    %vm282 = vcmp.lt.f32.partialorder %v281, 0.0004427343
    %v283 = vsel %vm282, %v280, %v277
    %v284 = vadd.f32 %v198, 1.0
    %v285 = vlog2.pop %v284
    %v286 = vmul.f32 %v285, 0.6931472
    %v287 = vmul.f32 -0.5, %v198
    %v288 = vadd.f32 %v287, 1.0
    %v289 = vmul.f32 %v288, %v198
    %v290 = vand.u32 2147483647, %v198
    %vm291 = vcmp.lt.f32.partialorder %v290, 0.0004427343
    %v292 = vsel %vm291, %v289, %v286
    %v293 = vadd.f32 %v200, 1.0
    %v294 = vlog2.pop %v293
    %v295 = vmul.f32 %v294, 0.6931472
    %v296 = vmul.f32 -0.5, %v200
    %v297 = vadd.f32 %v296, 1.0
    %v298 = vmul.f32 %v297, %v200
    %v299 = vand.u32 2147483647, %v200
    %vm300 = vcmp.lt.f32.partialorder %v299, 0.0004427343
    %v301 = vsel %vm300, %v298, %v295
    %v302 = vadd.f32 %v202, 1.0
    %v303 = vlog2.pop %v302
    %v304 = vmul.f32 %v303, 0.6931472
    %v305 = vmul.f32 -0.5, %v202
    %v306 = vadd.f32 %v305, 1.0
    %v307 = vmul.f32 %v306, %v202
    %v308 = vand.u32 2147483647, %v202
    %vm309 = vcmp.lt.f32.partialorder %v308, 0.0004427343
    %v310 = vsel %vm309, %v307, %v304
    %v311 = vadd.f32 %v155, %v211
    %v312 = vadd.f32 %v156, %v220
    %v313 = vadd.f32 %v157, %v229
    %v314 = vadd.f32 %v158, %v238
    %v315 = vadd.f32 %v159, %v247
    %v316 = vadd.f32 %v160, %v256
    %v317 = vadd.f32 %v161, %v265
    %v318 = vadd.f32 %v162, %v274
    %v319 = vadd.f32 %v163, %v283
    %v320 = vadd.f32 %v164, %v292
    %v321 = vadd.f32 %v165, %v301
    %v322 = vadd.f32 %v166, %v310
    %v323 = vld [vmem:[%s3] sm:$0xff]
    %v324 = vld [vmem:[%s3 + $0x8] sm:$0xff]
    %v325 = vld [vmem:[%s3 + $0x10] sm:$0xff]
    %v326 = vld [vmem:[%s3 + $0x18] sm:$0xff]
    %v327 = vld [vmem:[%s4] sm:$0xff]
    %v328 = vld [vmem:[%s4 + $0x8] sm:$0xff]
    %v329 = vld [vmem:[%s4 + $0x10] sm:$0xff]
    %v330 = vld [vmem:[%s4 + $0x18] sm:$0xff]
    %332 = vset.pattern.permute.xlu0 0
    %333 = vperm.xlu0 %332, %v327
    %v334 = vpop.permute.xlu0 %333
    %337 = vset.pattern.permute.xlu0 0
    %338 = vperm.xlu0 %337, %v328
    %v339 = vpop.permute.xlu0 %338
    %342 = vset.pattern.permute.xlu0 0
    %343 = vperm.xlu0 %342, %v329
    %v344 = vpop.permute.xlu0 %343
    %347 = vset.pattern.permute.xlu0 0
    %348 = vperm.xlu0 %347, %v330
    %v349 = vpop.permute.xlu0 %348
    %vm351 = vcmask 261120
    %v353 = vsel %vm351, %v323, 0
    %v356 = vsel %vm351, %v324, 0
    %v359 = vsel %vm351, %v325, 0
    %v362 = vsel %vm351, %v326, 0
    %364 = vmatpush.msra.mxu0 0.0
    %365 = vmatpush.msra.mxu0 0.0
    %366 = vmatpush.msra.mxu0 0.0
    %367 = vmatpush.msra.mxu0 0.0
    %368 = vmatpush.msra.mxu0 0.0
    %369 = vmatpush.msra.mxu0 0.0
    %370 = vmatpush.msra.mxu0 0.0
    %371 = vmatpush.msra.mxu0 0.0
    %372 = vmatpush.msra.mxu0 0.0
    %373 = vmatpush.msra.mxu0 0.0
    %374 = vmatpush.msra.mxu0 0.0
    %375 = vmatpush.msra.mxu0 0.0
    %376 = vmatpush.msra.mxu0 %v320
    %377 = vmatpush.msra.mxu0 %v317
    %378 = vmatpush.msra.mxu0 %v314
    %379 = vmatpush.msra.mxu0 %v311
    %380 = vmatmul.f32.gmra.mxu0 %v353
    %v381 = vpop.f32.mrf.mxu0
    %v382 = vadd.f32 %v334, %v381
    %383 = vmatmul.f32.gmra.mxu0 %v356
    %v384 = vpop.f32.mrf.mxu0
    %v385 = vadd.f32 %v339, %v384
    %386 = vmatmul.f32.gmra.mxu0 %v359
    %v387 = vpop.f32.mrf.mxu0
    %v388 = vadd.f32 %v344, %v387
    %389 = vmatmul.f32.gmra.mxu0 %v362
    %v390 = vpop.f32.mrf.mxu0
    %v391 = vadd.f32 %v349, %v390
    %392 = vdwg.mxu0
    %393 = vmatpush.msra.mxu0 0.0
    %394 = vmatpush.msra.mxu0 0.0
    %395 = vmatpush.msra.mxu0 0.0
    %396 = vmatpush.msra.mxu0 0.0
    %397 = vmatpush.msra.mxu0 0.0
    %398 = vmatpush.msra.mxu0 0.0
    %399 = vmatpush.msra.mxu0 0.0
    %400 = vmatpush.msra.mxu0 0.0
    %401 = vmatpush.msra.mxu0 0.0
    %402 = vmatpush.msra.mxu0 0.0
    %403 = vmatpush.msra.mxu0 0.0
    %404 = vmatpush.msra.mxu0 0.0
    %405 = vmatpush.msra.mxu0 %v321
    %406 = vmatpush.msra.mxu0 %v318
    %407 = vmatpush.msra.mxu0 %v315
    %408 = vmatpush.msra.mxu0 %v312
    %409 = vmatmul.f32.gmra.mxu0 %v353
    %v410 = vpop.f32.mrf.mxu0
    %v411 = vadd.f32 %v334, %v410
    %412 = vmatmul.f32.gmra.mxu0 %v356
    %v413 = vpop.f32.mrf.mxu0
    %v414 = vadd.f32 %v339, %v413
    %415 = vmatmul.f32.gmra.mxu0 %v359
    %v416 = vpop.f32.mrf.mxu0
    %v417 = vadd.f32 %v344, %v416
    %418 = vmatmul.f32.gmra.mxu0 %v362
    %v419 = vpop.f32.mrf.mxu0
    %v420 = vadd.f32 %v349, %v419
    %421 = vdwg.mxu0
    %422 = vmatpush.msra.mxu0 0.0
    %423 = vmatpush.msra.mxu0 0.0
    %424 = vmatpush.msra.mxu0 0.0
    %425 = vmatpush.msra.mxu0 0.0
    %426 = vmatpush.msra.mxu0 0.0
    %427 = vmatpush.msra.mxu0 0.0
    %428 = vmatpush.msra.mxu0 0.0
    %429 = vmatpush.msra.mxu0 0.0
    %430 = vmatpush.msra.mxu0 0.0
    %431 = vmatpush.msra.mxu0 0.0
    %432 = vmatpush.msra.mxu0 0.0
    %433 = vmatpush.msra.mxu0 0.0
    %434 = vmatpush.msra.mxu0 %v322
    %435 = vmatpush.msra.mxu0 %v319
    %436 = vmatpush.msra.mxu0 %v316
    %437 = vmatpush.msra.mxu0 %v313
    %438 = vmatmul.f32.gmra.mxu0 %v353
    %v439 = vpop.f32.mrf.mxu0
    %v440 = vadd.f32 %v334, %v439
    %441 = vmatmul.f32.gmra.mxu0 %v356
    %v442 = vpop.f32.mrf.mxu0
    %v443 = vadd.f32 %v339, %v442
    %444 = vmatmul.f32.gmra.mxu0 %v359
    %v445 = vpop.f32.mrf.mxu0
    %v446 = vadd.f32 %v344, %v445
    %447 = vmatmul.f32.gmra.mxu0 %v362
    %v448 = vpop.f32.mrf.mxu0
    %v449 = vadd.f32 %v349, %v448
    %450 = vdwg.mxu0
    %v451 = vand.u32 2147483647, %v382
    %v452 = vand.u32 2147483647, %v411
    %v453 = vand.u32 2147483647, %v440
    %v454 = vand.u32 2147483647, %v385
    %v455 = vand.u32 2147483647, %v414
    %v456 = vand.u32 2147483647, %v443
    %v457 = vand.u32 2147483647, %v388
    %v458 = vand.u32 2147483647, %v417
    %v459 = vand.u32 2147483647, %v446
    %v460 = vand.u32 2147483647, %v391
    %v461 = vand.u32 2147483647, %v420
    %v462 = vand.u32 2147483647, %v449
    %v463 = vmul.f32 %v451, -2.0
    %v464 = vmul.f32 %v452, -2.0
    %v465 = vmul.f32 %v453, -2.0
    %v466 = vmul.f32 %v454, -2.0
    %v467 = vmul.f32 %v455, -2.0
    %v468 = vmul.f32 %v456, -2.0
    %v469 = vmul.f32 %v457, -2.0
    %v470 = vmul.f32 %v458, -2.0
    %v471 = vmul.f32 %v459, -2.0
    %v472 = vmul.f32 %v460, -2.0
    %v473 = vmul.f32 %v461, -2.0
    %v474 = vmul.f32 %v462, -2.0
    %v475 = vmul.f32 %v463, 1.442695
    %v476 = vpow.pop %v475
    %v477 = vmul.f32 %v464, 1.442695
    %v478 = vpow.pop %v477
    %v479 = vmul.f32 %v465, 1.442695
    %v480 = vpow.pop %v479
    %v481 = vmul.f32 %v466, 1.442695
    %v482 = vpow.pop %v481
    %v483 = vmul.f32 %v467, 1.442695
    %v484 = vpow.pop %v483
    %v485 = vmul.f32 %v468, 1.442695
    %v486 = vpow.pop %v485
    %v487 = vmul.f32 %v469, 1.442695
    %v488 = vpow.pop %v487
    %v489 = vmul.f32 %v470, 1.442695
    %v490 = vpow.pop %v489
    %v491 = vmul.f32 %v471, 1.442695
    %v492 = vpow.pop %v491
    %v493 = vmul.f32 %v472, 1.442695
    %v494 = vpow.pop %v493
    %v495 = vmul.f32 %v473, 1.442695
    %v496 = vpow.pop %v495
    %v497 = vmul.f32 %v474, 1.442695
    %v498 = vpow.pop %v497
    %v499 = vadd.f32 %v476, 1.0
    %v500 = vlog2.pop %v499
    %v501 = vmul.f32 %v500, 0.6931472
    %v502 = vmul.f32 -0.5, %v476
    %v503 = vadd.f32 %v502, 1.0
    %v504 = vmul.f32 %v503, %v476
    %v505 = vand.u32 2147483647, %v476
    %vm506 = vcmp.lt.f32.partialorder %v505, 0.0004427343
    %v507 = vsel %vm506, %v504, %v501
    %v508 = vadd.f32 %v478, 1.0
    %v509 = vlog2.pop %v508
    %v510 = vmul.f32 %v509, 0.6931472
    %v511 = vmul.f32 -0.5, %v478
    %v512 = vadd.f32 %v511, 1.0
    %v513 = vmul.f32 %v512, %v478
    %v514 = vand.u32 2147483647, %v478
    %vm515 = vcmp.lt.f32.partialorder %v514, 0.0004427343
    %v516 = vsel %vm515, %v513, %v510
    %v517 = vadd.f32 %v480, 1.0
    %v518 = vlog2.pop %v517
    %v519 = vmul.f32 %v518, 0.6931472
    %v520 = vmul.f32 -0.5, %v480
    %v521 = vadd.f32 %v520, 1.0
    %v522 = vmul.f32 %v521, %v480
    %v523 = vand.u32 2147483647, %v480
    %vm524 = vcmp.lt.f32.partialorder %v523, 0.0004427343
    %v525 = vsel %vm524, %v522, %v519
    %v526 = vadd.f32 %v482, 1.0
    %v527 = vlog2.pop %v526
    %v528 = vmul.f32 %v527, 0.6931472
    %v529 = vmul.f32 -0.5, %v482
    %v530 = vadd.f32 %v529, 1.0
    %v531 = vmul.f32 %v530, %v482
    %v532 = vand.u32 2147483647, %v482
    %vm533 = vcmp.lt.f32.partialorder %v532, 0.0004427343
    %v534 = vsel %vm533, %v531, %v528
    %v535 = vadd.f32 %v484, 1.0
    %v536 = vlog2.pop %v535
    %v537 = vmul.f32 %v536, 0.6931472
    %v538 = vmul.f32 -0.5, %v484
    %v539 = vadd.f32 %v538, 1.0
    %v540 = vmul.f32 %v539, %v484
    %v541 = vand.u32 2147483647, %v484
    %vm542 = vcmp.lt.f32.partialorder %v541, 0.0004427343
    %v543 = vsel %vm542, %v540, %v537
    %v544 = vadd.f32 %v486, 1.0
    %v545 = vlog2.pop %v544
    %v546 = vmul.f32 %v545, 0.6931472
    %v547 = vmul.f32 -0.5, %v486
    %v548 = vadd.f32 %v547, 1.0
    %v549 = vmul.f32 %v548, %v486
    %v550 = vand.u32 2147483647, %v486
    %vm551 = vcmp.lt.f32.partialorder %v550, 0.0004427343
    %v552 = vsel %vm551, %v549, %v546
    %v553 = vadd.f32 %v488, 1.0
    %v554 = vlog2.pop %v553
    %v555 = vmul.f32 %v554, 0.6931472
    %v556 = vmul.f32 -0.5, %v488
    %v557 = vadd.f32 %v556, 1.0
    %v558 = vmul.f32 %v557, %v488
    %v559 = vand.u32 2147483647, %v488
    %vm560 = vcmp.lt.f32.partialorder %v559, 0.0004427343
    %v561 = vsel %vm560, %v558, %v555
    %v562 = vadd.f32 %v490, 1.0
    %v563 = vlog2.pop %v562
    %v564 = vmul.f32 %v563, 0.6931472
    %v565 = vmul.f32 -0.5, %v490
    %v566 = vadd.f32 %v565, 1.0
    %v567 = vmul.f32 %v566, %v490
    %v568 = vand.u32 2147483647, %v490
    %vm569 = vcmp.lt.f32.partialorder %v568, 0.0004427343
    %v570 = vsel %vm569, %v567, %v564
    %v571 = vadd.f32 %v492, 1.0
    %v572 = vlog2.pop %v571
    %v573 = vmul.f32 %v572, 0.6931472
    %v574 = vmul.f32 -0.5, %v492
    %v575 = vadd.f32 %v574, 1.0
    %v576 = vmul.f32 %v575, %v492
    %v577 = vand.u32 2147483647, %v492
    %vm578 = vcmp.lt.f32.partialorder %v577, 0.0004427343
    %v579 = vsel %vm578, %v576, %v573
    %v580 = vadd.f32 %v494, 1.0
    %v581 = vlog2.pop %v580
    %v582 = vmul.f32 %v581, 0.6931472
    %v583 = vmul.f32 -0.5, %v494
    %v584 = vadd.f32 %v583, 1.0
    %v585 = vmul.f32 %v584, %v494
    %v586 = vand.u32 2147483647, %v494
    %vm587 = vcmp.lt.f32.partialorder %v586, 0.0004427343
    %v588 = vsel %vm587, %v585, %v582
    %v589 = vadd.f32 %v496, 1.0
    %v590 = vlog2.pop %v589
    %v591 = vmul.f32 %v590, 0.6931472
    %v592 = vmul.f32 -0.5, %v496
    %v593 = vadd.f32 %v592, 1.0
    %v594 = vmul.f32 %v593, %v496
    %v595 = vand.u32 2147483647, %v496
    %vm596 = vcmp.lt.f32.partialorder %v595, 0.0004427343
    %v597 = vsel %vm596, %v594, %v591
    %v598 = vadd.f32 %v498, 1.0
    %v599 = vlog2.pop %v598
    %v600 = vmul.f32 %v599, 0.6931472
    %v601 = vmul.f32 -0.5, %v498
    %v602 = vadd.f32 %v601, 1.0
    %v603 = vmul.f32 %v602, %v498
    %v604 = vand.u32 2147483647, %v498
    %vm605 = vcmp.lt.f32.partialorder %v604, 0.0004427343
    %v606 = vsel %vm605, %v603, %v600
    %v607 = vadd.f32 %v451, %v507
    %v608 = vadd.f32 %v452, %v516
    %v609 = vadd.f32 %v453, %v525
    %v610 = vadd.f32 %v454, %v534
    %v611 = vadd.f32 %v455, %v543
    %v612 = vadd.f32 %v456, %v552
    %v613 = vadd.f32 %v457, %v561
    %v614 = vadd.f32 %v458, %v570
    %v615 = vadd.f32 %v459, %v579
    %v616 = vadd.f32 %v460, %v588
    %v617 = vadd.f32 %v461, %v597
    %v618 = vadd.f32 %v462, %v606
    %v619 = vmul.f32 %v607, 0.01
    %v620 = vmul.f32 %v608, 0.01
    %v621 = vmul.f32 %v609, 0.01
    %v622 = vmul.f32 %v610, 0.01
    %v623 = vmul.f32 %v611, 0.01
    %v624 = vmul.f32 %v612, 0.01
    %v625 = vmul.f32 %v613, 0.01
    %v626 = vmul.f32 %v614, 0.01
    %v627 = vmul.f32 %v615, 0.01
    %v628 = vmul.f32 %v616, 0.01
    %v629 = vmul.f32 %v617, 0.01
    %v630 = vmul.f32 %v618, 0.01
    %v631 = vadd.f32 %v311, %v619
    %v632 = vadd.f32 %v312, %v620
    %v633 = vadd.f32 %v313, %v621
    %v634 = vadd.f32 %v314, %v622
    %v635 = vadd.f32 %v315, %v623
    %v636 = vadd.f32 %v316, %v624
    %v637 = vadd.f32 %v317, %v625
    %v638 = vadd.f32 %v318, %v626
    %v639 = vadd.f32 %v319, %v627
    %v640 = vadd.f32 %v320, %v628
    %v641 = vadd.f32 %v321, %v629
    %v642 = vadd.f32 %v322, %v630
    %643 = vst [vmem:[#allocation2] sm:$0xff] %v631
    %644 = vst [vmem:[#allocation2 + $0x8] sm:$0xff] %v632
    %645 = vst [vmem:[#allocation2 + $0x10] sm:$0xff] %v633
    %646 = vst [vmem:[#allocation2 + $0x18] sm:$0xff] %v634
    %647 = vst [vmem:[#allocation2 + $0x20] sm:$0xff] %v635
    %648 = vst [vmem:[#allocation2 + $0x28] sm:$0xff] %v636
    %649 = vst [vmem:[#allocation2 + $0x30] sm:$0xff] %v637
    %650 = vst [vmem:[#allocation2 + $0x38] sm:$0xff] %v638
    %651 = vst [vmem:[#allocation2 + $0x40] sm:$0xff] %v639
    %652 = vst [vmem:[#allocation2 + $0x48] sm:$0xff] %v640
    %653 = vst [vmem:[#allocation2 + $0x50] sm:$0xff] %v641
    %654 = vst [vmem:[#allocation2 + $0x58] sm:$0xff] %v642
    // Predicated region
    $region22: #{tpu_custom_call.1} parent=1 // pred_check
      _
    $region23: #{tpu_custom_call.1} parent=1 // pred_check_branch
      %656 = sbr.rel (0) target = $region25
    $region24: #{tpu_custom_call.1} parent=1 // pred_region
      %658 = vsyncadd [#allocation3], 0
      %s659 = sshll.u32 [#allocation2], 4
      %s660 = int_to_ptr.vmem [resolvable:$true] %s659
      %s661 = sshll.u32 %s5, 4
      %s662 = int_to_ptr.hbm [resolvable:$true] %s661
      %667 = dma.vmem_to_hbm [thread:$0]  %s660, 1536, %s662, [#allocation3], 384, 384, 24
    $region25: #{tpu_custom_call.1} parent=1 // pred_fallthru
      _
    // Predicated region
    $region26: #{tpu_custom_call.1} parent=1 // pred_check
      _
    $region27: #{tpu_custom_call.1} parent=1 // pred_check_branch
      %669 = sbr.rel (0) target = $region29
    $region28: #{tpu_custom_call.1} parent=1 // pred_region
      %671 = dma.done [#allocation3], 1536
    $region29: #{tpu_custom_call.1} parent=1 // pred_fallthru
      _
    %672 = vsyncpa [#allocation3], 1

</llo_original>
